<compile_context>
chip_gen: v5e
topology: v5e:2x2
jax: 0.10.0
libtpu: 0.0.40
codegen_flags: <defaults>
</compile_context>

<pallas_src>
import functools

import jax
import jax.numpy as jnp
from jax.experimental import pallas as pl
from jax.experimental.pallas import tpu as pltpu

LN_EPS = 1e-5  # PyTorch nn.LayerNorm default

# Rows of the packed (8, Hmax) vector-parameter operand.
_ROW_B1, _ROW_G1, _ROW_BE1, _ROW_B2, _ROW_G2, _ROW_BE2, _ROW_WV, _ROW_BV = range(8)


def _round_up(x, m):
    return (x + m - 1) // m * m


def _critic_kernel(hidden0, hidden1, matmul_dtype,
                   in_ref, act_ref, w1in_ref, w1act_ref, w2_ref, pvec_ref,
                   out_ref):
    H0, H1 = hidden0, hidden1

    # ---- packed vector params (static slices of one VMEM tile) ----
    b1 = pvec_ref[_ROW_B1:_ROW_B1 + 1, :H0]
    g1 = pvec_ref[_ROW_G1:_ROW_G1 + 1, :H0]
    be1 = pvec_ref[_ROW_BE1:_ROW_BE1 + 1, :H0]
    b2 = pvec_ref[_ROW_B2:_ROW_B2 + 1, :H1]
    g2 = pvec_ref[_ROW_G2:_ROW_G2 + 1, :H1]
    be2 = pvec_ref[_ROW_BE2:_ROW_BE2 + 1, :H1]
    bv = pvec_ref[_ROW_BV:_ROW_BV + 1, 0:1]        # (1, 1) scalar, broadcasts

    # ---- linear1: split-weight matmul replaces the activation concat ----
    xi = in_ref[...].astype(matmul_dtype)
    xa = act_ref[...].astype(matmul_dtype)
    h = (jnp.dot(xi, w1in_ref[...], preferred_element_type=jnp.float32)
         + jnp.dot(xa, w1act_ref[...], preferred_element_type=jnp.float32)
         + b1)

    # ---- LayerNorm 1 (one-pass stats: both reductions depend only on h) ----
    mu = jnp.mean(h, axis=-1, keepdims=True)
    ms = jnp.mean(h * h, axis=-1, keepdims=True)
    h = (h - mu) * jax.lax.rsqrt(ms - mu * mu + LN_EPS)
    h = jnp.tanh(h * g1 + be1)

    # ---- linear2 ----
    h2 = jnp.dot(h.astype(matmul_dtype), w2_ref[...],
                 preferred_element_type=jnp.float32) + b2

    # ---- LayerNorm 2 ----
    mu2 = jnp.mean(h2, axis=-1, keepdims=True)
    ms2 = jnp.mean(h2 * h2, axis=-1, keepdims=True)
    h2 = (h2 - mu2) * jax.lax.rsqrt(ms2 - mu2 * mu2 + LN_EPS)
    h2 = jnp.tanh(h2 * g2 + be2)

    # ---- value head: NT matmul against the resident pvec tile (M=8, lane-
    # dense (1, TILE_B) result).  Row _ROW_WV of pvec is the head weight; the
    # other 7 row-products cost nothing extra on the MXU and are discarded. ----
    vall = jax.lax.dot_general(
        pvec_ref[:, :H1].astype(matmul_dtype), h2.astype(matmul_dtype),
        dimension_numbers=(((1,), (1,)), ((), ())),
        preferred_element_type=jnp.float32)                 # (8, TILE_B)
    v_row = vall[_ROW_WV:_ROW_WV + 1, :] + bv               # (1, TILE_B)
    out_ref[...] = v_row.astype(out_ref.dtype)


def critic_forward(inputs, actions, params, *, tile_b=512,
                   matmul_dtype=jnp.bfloat16):
    """inputs: (B, num_inputs), actions: (B, num_actions) -> (B, 1) f32."""
    inputs = jnp.asarray(inputs, jnp.float32)
    actions = jnp.asarray(actions, jnp.float32)
    B, n_in = inputs.shape
    n_act = actions.shape[1]
    H0 = params["w1"].shape[1]
    H1 = params["w2"].shape[1]
    Hmax = max(H0, H1)

    # Split linear1's weight instead of concatenating activations on the host.
    w1_in = params["w1"][:n_in, :].astype(matmul_dtype)
    w1_act = params["w1"][n_in:, :].astype(matmul_dtype)
    w2 = params["w2"].astype(matmul_dtype)

    # Pack all small vector params into a single (8, Hmax) f32 operand.
    def _row(v, width):
        v = jnp.reshape(jnp.asarray(v, jnp.float32), (1, -1))
        return jnp.pad(v, ((0, 0), (0, Hmax - width)))

    pvec = jnp.concatenate([
        _row(params["b1"], H0), _row(params["g1"], H0), _row(params["be1"], H0),
        _row(params["b2"], H1), _row(params["g2"], H1), _row(params["be2"], H1),
        _row(params["wv"], H1), _row(params["bv"], 1),
    ], axis=0)                                                  # (8, Hmax)

    tb = min(_round_up(int(tile_b), 8), _round_up(B, 8))        # sublane-aligned
    grid_b = pl.cdiv(B, tb)

    kernel = functools.partial(_critic_kernel, H0, H1, matmul_dtype)
    out = pl.pallas_call(
        kernel,
        out_shape=jax.ShapeDtypeStruct((grid_b, 1, tb), jnp.float32),
        grid=(grid_b,),
        in_specs=[
            pl.BlockSpec((tb, n_in), lambda i: (i, 0)),     # inputs (batch-tiled)
            pl.BlockSpec((tb, n_act), lambda i: (i, 0)),    # actions (batch-tiled)
            pl.BlockSpec((n_in, H0), lambda i: (0, 0)),     # W1_in  (VMEM-resident)
            pl.BlockSpec((n_act, H0), lambda i: (0, 0)),    # W1_act (VMEM-resident)
            pl.BlockSpec((H0, H1), lambda i: (0, 0)),       # W2     (VMEM-resident)
            pl.BlockSpec((8, Hmax), lambda i: (0, 0)),      # packed vector params
        ],
        # Lane-dense output slab: each grid step writes a full (1, tb) row.
        out_specs=pl.BlockSpec((None, 1, tb), lambda i: (i, 0, 0)),
        compiler_params=pltpu.CompilerParams(
            dimension_semantics=("parallel",)),
    )(inputs, actions, w1_in, w1_act, w2, pvec)

    # (grid_b, 1, tb) -> (B, 1): contiguous reshape + tiny slice (padded rows of
    # the final partial tile are discarded here).
    return out.reshape(-1)[:B].reshape(B, 1)


def init_params(key, num_inputs, num_actions, hidden0, hidden1):
    """Deterministic init matching the PyTorch module's __init__ semantics."""
    d_in = num_inputs + num_actions
    k = jax.random.split(key, 6)
    # linear1: weight ~ N(0, 0.02), bias ~ U(-1/sqrt(fan_in), 1/sqrt(fan_in))
    w1 = 0.02 * jax.random.normal(k[0], (d_in, hidden0), jnp.float32)
    b1 = jax.random.uniform(k[1], (hidden0,), jnp.float32,
                            -1.0 / jnp.sqrt(d_in), 1.0 / jnp.sqrt(d_in))
    g1 = jnp.ones((hidden0,), jnp.float32)          # LayerNorm defaults
    be1 = jnp.zeros((hidden0,), jnp.float32)
    # linear2
    w2 = 0.02 * jax.random.normal(k[2], (hidden0, hidden1), jnp.float32)
    b2 = jax.random.uniform(k[3], (hidden1,), jnp.float32,
                            -1.0 / jnp.sqrt(hidden0), 1.0 / jnp.sqrt(hidden0))
    g2 = jnp.ones((hidden1,), jnp.float32)
    be2 = jnp.zeros((hidden1,), jnp.float32)
    # V head: weight ~ U(-0.003, 0.003), bias default U(-1/sqrt(fan_in), ...)
    wv = jax.random.uniform(k[4], (hidden1,), jnp.float32, -0.003, 0.003)
    bv = jax.random.uniform(k[5], (1,), jnp.float32,
                            -1.0 / jnp.sqrt(hidden1), 1.0 / jnp.sqrt(hidden1))
    return dict(w1=w1, b1=b1, g1=g1, be1=be1,
                w2=w2, b2=b2, g2=g2, be2=be2,
                wv=wv, bv=bv)


def critic_reference(inputs, actions, p):
    """Pure-JAX reference (matches the PyTorch forward)."""
    x = jnp.concatenate([inputs, actions], axis=1)
    h = x @ p["w1"] + p["b1"]
    mu = jnp.mean(h, -1, keepdims=True)
    var = jnp.mean((h - mu) ** 2, -1, keepdims=True)
    h = jnp.tanh((h - mu) / jnp.sqrt(var + LN_EPS) * p["g1"] + p["be1"])
    h2 = h @ p["w2"] + p["b2"]
    mu2 = jnp.mean(h2, -1, keepdims=True)
    var2 = jnp.mean((h2 - mu2) ** 2, -1, keepdims=True)
    h2 = jnp.tanh((h2 - mu2) / jnp.sqrt(var2 + LN_EPS) * p["g2"] + p["be2"])
    return h2 @ p["wv"][:, None] + p["bv"]


if __name__ == "__main__":
    key = jax.random.PRNGKey(0)
    B, NUM_INPUTS, NUM_ACTIONS = 8, 24, 8
    HIDDEN0, HIDDEN1 = 32, 32   # TODO(synk): 128-wide hidden (or a 4-critic
                                # ensemble packed on the lane axis) would use the
                                # full (8,128) lanes / MXU columns.

    k_in, k_act, k_par = jax.random.split(key, 3)
    inputs = jax.random.normal(k_in, (B, NUM_INPUTS), jnp.float32)
    actions = jax.random.normal(k_act, (B, NUM_ACTIONS), jnp.float32)
    params = init_params(k_par, NUM_INPUTS, NUM_ACTIONS, HIDDEN0, HIDDEN1)

    v_ref = critic_reference(inputs, actions, params)

    # 1) f32 MXU path: semantics check against the reference.
    v_f32 = critic_forward(inputs, actions, params, matmul_dtype=jnp.float32)
    jax.block_until_ready(v_f32)
    assert v_f32.shape == (B, 1)
    assert jnp.allclose(v_f32, v_ref, atol=1e-4, rtol=1e-4), (v_f32, v_ref)

    # 2) default bf16 MXU path (v6e/v7x-friendly): relaxed tolerance.
    v_bf16 = critic_forward(inputs, actions, params)
    jax.block_until_ready(v_bf16)
    assert jnp.allclose(v_bf16, v_ref, atol=1e-2, rtol=1e-2), (v_bf16, v_ref)

    # 3) multi-step grid + partial last tile (still small shapes).
    B2 = 40
    k_in2, k_act2 = jax.random.split(jax.random.PRNGKey(1), 2)
    inputs2 = jax.random.normal(k_in2, (B2, NUM_INPUTS), jnp.float32)
    actions2 = jax.random.normal(k_act2, (B2, NUM_ACTIONS), jnp.float32)
    v2 = critic_forward(inputs2, actions2, params, tile_b=16,
                        matmul_dtype=jnp.float32)
    jax.block_until_ready(v2)
    v2_ref = critic_reference(inputs2, actions2, params)
    assert v2.shape == (B2, 1)
    assert jnp.allclose(v2, v2_ref, atol=1e-4, rtol=1e-4), (v2, v2_ref)

    print("KERNEL_OK")
</pallas_src>

<mosaic_0001>
module attributes {stable_mosaic.version = 11 : i64} {
  func.func @_critic_kernel(%arg0: i32, %arg1: memref<8x24xf32, #tpu.memory_space<vmem>>, %arg2: memref<8x8xf32, #tpu.memory_space<vmem>>, %arg3: memref<24x32xf32, #tpu.memory_space<vmem>>, %arg4: memref<8x32xf32, #tpu.memory_space<vmem>>, %arg5: memref<32x32xf32, #tpu.memory_space<vmem>>, %arg6: memref<8x32xf32, #tpu.memory_space<vmem>>, %arg7: memref<1x1x8xf32, #tpu.memory_space<vmem>>) attributes {dimension_semantics = [#tpu.dimension_semantics<parallel>], iteration_bounds = array<i64: 1>, scalar_prefetch = 0 : i64, scratch_operands = 0 : i64, tpu.core_type = #tpu.core_type<tc>, window_params = [{transform_indices = @transform_0, window_bounds = array<i64: 8, 24>}, {transform_indices = @transform_1, window_bounds = array<i64: 8, 8>}, {pipeline_mode = #tpu.pipeline_mode<synchronous>, transform_indices = @transform_2, window_bounds = array<i64: 24, 32>}, {pipeline_mode = #tpu.pipeline_mode<synchronous>, transform_indices = @transform_3, window_bounds = array<i64: 8, 32>}, {pipeline_mode = #tpu.pipeline_mode<synchronous>, transform_indices = @transform_4, window_bounds = array<i64: 32, 32>}, {pipeline_mode = #tpu.pipeline_mode<synchronous>, transform_indices = @transform_5, window_bounds = array<i64: 8, 32>}, {transform_indices = @transform_6, window_bounds = array<i64: 1, 1, 8>}]} {
    %c0 = arith.constant 0 : index
    %c0_0 = arith.constant 0 : index
    %0 = vector.load %arg6[%c0, %c0_0] : memref<8x32xf32, #tpu.memory_space<vmem>>, vector<1x32xf32>
    %c1 = arith.constant 1 : index
    %c0_1 = arith.constant 0 : index
    %1 = vector.load %arg6[%c1, %c0_1] : memref<8x32xf32, #tpu.memory_space<vmem>>, vector<1x32xf32>
    %c2 = arith.constant 2 : index
    %c0_2 = arith.constant 0 : index
    %2 = vector.load %arg6[%c2, %c0_2] : memref<8x32xf32, #tpu.memory_space<vmem>>, vector<1x32xf32>
    %c3 = arith.constant 3 : index
    %c0_3 = arith.constant 0 : index
    %3 = vector.load %arg6[%c3, %c0_3] : memref<8x32xf32, #tpu.memory_space<vmem>>, vector<1x32xf32>
    %c4 = arith.constant 4 : index
    %c0_4 = arith.constant 0 : index
    %4 = vector.load %arg6[%c4, %c0_4] : memref<8x32xf32, #tpu.memory_space<vmem>>, vector<1x32xf32>
    %c5 = arith.constant 5 : index
    %c0_5 = arith.constant 0 : index
    %5 = vector.load %arg6[%c5, %c0_5] : memref<8x32xf32, #tpu.memory_space<vmem>>, vector<1x32xf32>
    %c7 = arith.constant 7 : index
    %c0_6 = arith.constant 0 : index
    %6 = vector.load %arg6[%c7, %c0_6] : memref<8x32xf32, #tpu.memory_space<vmem>>, vector<1x1xf32>
    %c0_7 = arith.constant 0 : index
    %c0_8 = arith.constant 0 : index
    %7 = vector.load %arg1[%c0_7, %c0_8] : memref<8x24xf32, #tpu.memory_space<vmem>>, vector<8x24xf32>
    %c0_9 = arith.constant 0 : index
    %c0_10 = arith.constant 0 : index
    %8 = vector.load %arg2[%c0_9, %c0_10] : memref<8x8xf32, #tpu.memory_space<vmem>>, vector<8x8xf32>
    %c0_11 = arith.constant 0 : index
    %c0_12 = arith.constant 0 : index
    %9 = vector.load %arg3[%c0_11, %c0_12] : memref<24x32xf32, #tpu.memory_space<vmem>>, vector<24x32xf32>
    %cst = arith.constant dense<0.000000e+00> : vector<8x32xf32>
    %10 = tpu.matmul %7, %9, %cst {dimension_numbers = #tpu.dot_dimension_numbers<[1], [0], [0], [1], [0, 0, 1, 1], [], []>} : vector<8x24xf32>, vector<24x32xf32>, vector<8x32xf32> -> vector<8x32xf32>
    %c0_13 = arith.constant 0 : index
    %c0_14 = arith.constant 0 : index
    %11 = vector.load %arg4[%c0_13, %c0_14] : memref<8x32xf32, #tpu.memory_space<vmem>>, vector<8x32xf32>
    %cst_15 = arith.constant dense<0.000000e+00> : vector<8x32xf32>
    %12 = tpu.matmul %8, %11, %cst_15 {dimension_numbers = #tpu.dot_dimension_numbers<[1], [0], [0], [1], [0, 0, 1, 1], [], []>} : vector<8x8xf32>, vector<8x32xf32>, vector<8x32xf32> -> vector<8x32xf32>
    %13 = arith.addf %10, %12 : vector<8x32xf32>
    %14 = vector.broadcast %0 : vector<1x32xf32> to vector<8x32xf32>
    %15 = arith.addf %13, %14 : vector<8x32xf32>
    %cst_16 = arith.constant dense<0.000000e+00> : vector<8xf32>
    %16 = vector.multi_reduction <add>, %15, %cst_16 [1] : vector<8x32xf32> to vector<8xf32>
    %17 = vector.shape_cast %16 : vector<8xf32> to vector<8x1xf32>
    %cst_17 = arith.constant 3.200000e+01 : f32
    %18 = vector.broadcast %cst_17 : f32 to vector<8x1xf32>
    %19 = arith.divf %17, %18 : vector<8x1xf32>
    %20 = arith.mulf %15, %15 : vector<8x32xf32>
    %cst_18 = arith.constant dense<0.000000e+00> : vector<8xf32>
    %21 = vector.multi_reduction <add>, %20, %cst_18 [1] : vector<8x32xf32> to vector<8xf32>
    %22 = vector.shape_cast %21 : vector<8xf32> to vector<8x1xf32>
    %cst_19 = arith.constant 3.200000e+01 : f32
    %23 = vector.broadcast %cst_19 : f32 to vector<8x1xf32>
    %24 = arith.divf %22, %23 : vector<8x1xf32>
    %25 = vector.broadcast %19 : vector<8x1xf32> to vector<8x32xf32>
    %26 = arith.subf %15, %25 : vector<8x32xf32>
    %27 = arith.mulf %19, %19 : vector<8x1xf32>
    %28 = arith.subf %24, %27 : vector<8x1xf32>
    %cst_20 = arith.constant 9.99999974E-6 : f32
    %29 = vector.broadcast %cst_20 : f32 to vector<8x1xf32>
    %30 = arith.addf %28, %29 : vector<8x1xf32>
    %31 = math.rsqrt %30 : vector<8x1xf32>
    %32 = vector.broadcast %31 : vector<8x1xf32> to vector<8x32xf32>
    %33 = arith.mulf %26, %32 : vector<8x32xf32>
    %34 = vector.broadcast %1 : vector<1x32xf32> to vector<8x32xf32>
    %35 = arith.mulf %33, %34 : vector<8x32xf32>
    %36 = vector.broadcast %2 : vector<1x32xf32> to vector<8x32xf32>
    %37 = arith.addf %35, %36 : vector<8x32xf32>
    %38 = math.tanh %37 : vector<8x32xf32>
    %c0_21 = arith.constant 0 : index
    %c0_22 = arith.constant 0 : index
    %39 = vector.load %arg5[%c0_21, %c0_22] : memref<32x32xf32, #tpu.memory_space<vmem>>, vector<32x32xf32>
    %cst_23 = arith.constant dense<0.000000e+00> : vector<8x32xf32>
    %40 = tpu.matmul %38, %39, %cst_23 {dimension_numbers = #tpu.dot_dimension_numbers<[1], [0], [0], [1], [0, 0, 1, 1], [], []>} : vector<8x32xf32>, vector<32x32xf32>, vector<8x32xf32> -> vector<8x32xf32>
    %41 = vector.broadcast %3 : vector<1x32xf32> to vector<8x32xf32>
    %42 = arith.addf %40, %41 : vector<8x32xf32>
    %cst_24 = arith.constant dense<0.000000e+00> : vector<8xf32>
    %43 = vector.multi_reduction <add>, %42, %cst_24 [1] : vector<8x32xf32> to vector<8xf32>
    %44 = vector.shape_cast %43 : vector<8xf32> to vector<8x1xf32>
    %cst_25 = arith.constant 3.200000e+01 : f32
    %45 = vector.broadcast %cst_25 : f32 to vector<8x1xf32>
    %46 = arith.divf %44, %45 : vector<8x1xf32>
    %47 = arith.mulf %42, %42 : vector<8x32xf32>
    %cst_26 = arith.constant dense<0.000000e+00> : vector<8xf32>
    %48 = vector.multi_reduction <add>, %47, %cst_26 [1] : vector<8x32xf32> to vector<8xf32>
    %49 = vector.shape_cast %48 : vector<8xf32> to vector<8x1xf32>
    %cst_27 = arith.constant 3.200000e+01 : f32
    %50 = vector.broadcast %cst_27 : f32 to vector<8x1xf32>
    %51 = arith.divf %49, %50 : vector<8x1xf32>
    %52 = vector.broadcast %46 : vector<8x1xf32> to vector<8x32xf32>
    %53 = arith.subf %42, %52 : vector<8x32xf32>
    %54 = arith.mulf %46, %46 : vector<8x1xf32>
    %55 = arith.subf %51, %54 : vector<8x1xf32>
    %cst_28 = arith.constant 9.99999974E-6 : f32
    %56 = vector.broadcast %cst_28 : f32 to vector<8x1xf32>
    %57 = arith.addf %55, %56 : vector<8x1xf32>
    %58 = math.rsqrt %57 : vector<8x1xf32>
    %59 = vector.broadcast %58 : vector<8x1xf32> to vector<8x32xf32>
    %60 = arith.mulf %53, %59 : vector<8x32xf32>
    %61 = vector.broadcast %4 : vector<1x32xf32> to vector<8x32xf32>
    %62 = arith.mulf %60, %61 : vector<8x32xf32>
    %63 = vector.broadcast %5 : vector<1x32xf32> to vector<8x32xf32>
    %64 = arith.addf %62, %63 : vector<8x32xf32>
    %65 = math.tanh %64 : vector<8x32xf32>
    %c0_29 = arith.constant 0 : index
    %c0_30 = arith.constant 0 : index
    %66 = vector.load %arg6[%c0_29, %c0_30] : memref<8x32xf32, #tpu.memory_space<vmem>>, vector<8x32xf32>
    %cst_31 = arith.constant dense<0.000000e+00> : vector<8x8xf32>
    %67 = tpu.matmul %66, %65, %cst_31 {dimension_numbers = #tpu.dot_dimension_numbers<[1], [1], [0], [0], [0, 0, 1, 0], [], []>} : vector<8x32xf32>, vector<8x32xf32>, vector<8x8xf32> -> vector<8x8xf32>
    %68 = vector.extract_strided_slice %67 {offsets = [6, 0], sizes = [1, 8], strides = [1, 1]} : vector<8x8xf32> to vector<1x8xf32>
    %69 = vector.broadcast %6 : vector<1x1xf32> to vector<1x8xf32>
    %70 = arith.addf %68, %69 : vector<1x8xf32>
    %c0_32 = arith.constant 0 : index
    %c0_33 = arith.constant 0 : index
    %c0_34 = arith.constant 0 : index
    %71 = vector.load %arg7[%c0_32, %c0_33, %c0_34] : memref<1x1x8xf32, #tpu.memory_space<vmem>>, vector<1x1x8xf32>
    %72 = vector.shape_cast %71 : vector<1x1x8xf32> to vector<1x8xf32>
    %73 = vector.shape_cast %70 : vector<1x8xf32> to vector<1x1x8xf32>
    tpu.vector_store %arg7[%c0_32, %c0_33, %c0_34], %73 {strides = array<i32>} : memref<1x1x8xf32, #tpu.memory_space<vmem>>, vector<1x1x8xf32>,
    return
  }
  func.func @transform_0(%arg0: i32) -> (i32, i32) {
    %c0_i32 = arith.constant 0 : i32
    %c0_i32_0 = arith.constant 0 : i32
    return %arg0, %c0_i32 : i32, i32
  }
  func.func @transform_1(%arg0: i32) -> (i32, i32) {
    %c0_i32 = arith.constant 0 : i32
    %c0_i32_0 = arith.constant 0 : i32
    return %arg0, %c0_i32 : i32, i32
  }
  func.func @transform_2(%arg0: i32) -> (i32, i32) {
    %c0_i32 = arith.constant 0 : i32
    %c0_i32_0 = arith.constant 0 : i32
    %c0_i32_1 = arith.constant 0 : i32
    return %c0_i32, %c0_i32_0 : i32, i32
  }
  func.func @transform_3(%arg0: i32) -> (i32, i32) {
    %c0_i32 = arith.constant 0 : i32
    %c0_i32_0 = arith.constant 0 : i32
    %c0_i32_1 = arith.constant 0 : i32
    return %c0_i32, %c0_i32_0 : i32, i32
  }
  func.func @transform_4(%arg0: i32) -> (i32, i32) {
    %c0_i32 = arith.constant 0 : i32
    %c0_i32_0 = arith.constant 0 : i32
    %c0_i32_1 = arith.constant 0 : i32
    return %c0_i32, %c0_i32_0 : i32, i32
  }
  func.func @transform_5(%arg0: i32) -> (i32, i32) {
    %c0_i32 = arith.constant 0 : i32
    %c0_i32_0 = arith.constant 0 : i32
    %c0_i32_1 = arith.constant 0 : i32
    return %c0_i32, %c0_i32_0 : i32, i32
  }
  func.func @transform_6(%arg0: i32) -> (i32, i32, i32) {
    %c0_i32 = arith.constant 0 : i32
    %c0_i32_0 = arith.constant 0 : i32
    %c0_i32_1 = arith.constant 0 : i32
    return %arg0, %c0_i32, %c0_i32_0 : i32, i32, i32
  }
}

</mosaic_0001>

<llo_original>
// kernel: tpu_custom_call.1
$region0: #{tpu_custom_call.1}
  #allocation0 [shape = 'u32[]', space=smem, size = 0x4, offset = 0x4, fixed_abs, tag = 'smem constant byte address 0x4 - core index']
  #allocation1 [shape = 'u32[72,128]{1,0:T(1,128)}', space=vmem, size = 0x9000, scoped, tag = 'internal scratch']
  %s0 = inlined_call_operand.hbm [shape: f32[8,24], index: 0, kind: input, shape index: {}]
  %s1 = inlined_call_operand.hbm [shape: f32[8,8], index: 1, kind: input, shape index: {}]
  %s2 = inlined_call_operand.hbm [shape: f32[24,32], index: 2, kind: input, shape index: {}]
  %s3 = inlined_call_operand.hbm [shape: f32[8,32], index: 3, kind: input, shape index: {}]
  %s4 = inlined_call_operand.hbm [shape: f32[32,32], index: 4, kind: input, shape index: {}]
  %s5 = inlined_call_operand.hbm [shape: f32[8,32], index: 5, kind: input, shape index: {}]
  %s6 = inlined_call_operand.hbm [shape: f32[1,1,8], index: 6, kind: output, shape index: {}]
  %s7 = sld [smem:[#allocation0]]
  $region58: #{tpu_custom_call.1} parent=0
    _
  %s9 = ssub.s32 1, %s7
  %s10 = scalar_select 0, %s9, %s7
  $region1: #{tpu_custom_call.1} parent=0
    #allocation2 [shape = 'u8[4096]{0}', space=vmem, size = 0x1000, scoped, tag = 'input window, operand 0, single buffered']
    #allocation3 [shape = 's32[1]{0}', space=sflag, size = 0x4, scoped, tag = 'scoped memory for tpu_custom_call.1']
    #allocation4 [shape = 's32[1]{0}', space=sflag, size = 0x4, scoped, tag = 'scoped memory for tpu_custom_call.1']
    #allocation5 [shape = 'u8[4096]{0}', space=vmem, size = 0x1000, scoped, tag = 'input window, operand 1, single buffered']
    #allocation6 [shape = 's32[1]{0}', space=sflag, size = 0x4, scoped, tag = 'scoped memory for tpu_custom_call.1']
    #allocation7 [shape = 'u8[12288]{0}', space=vmem, size = 0x3000, scoped, tag = 'input window, operand 2, single buffered']
    #allocation8 [shape = 'u8[4096]{0}', space=vmem, size = 0x1000, scoped, tag = 'input window, operand 3, single buffered']
    #allocation9 [shape = 's32[1]{0}', space=sflag, size = 0x4, scoped, tag = 'scoped memory for tpu_custom_call.1']
    #allocation10 [shape = 'u8[16384]{0}', space=vmem, size = 0x4000, scoped, tag = 'input window, operand 4, single buffered']
    #allocation11 [shape = 'u8[4096]{0}', space=vmem, size = 0x1000, scoped, tag = 'input window, operand 5, single buffered']
    #allocation12 [shape = 's32[1]{0}', space=sflag, size = 0x4, scoped, tag = 'scoped memory for tpu_custom_call.1']
    #allocation13 [shape = 'u8[512]{0}', space=vmem, size = 0x400, scoped, tag = 'output window, operand 0, single buffered']
    %11 = vsyncpa [#allocation3], 0
    %12 = vsyncpa [#allocation6], 0
    %13 = vsyncpa [#allocation9], 0
    %14 = vsyncpa [#allocation12], 0
    %15 = vsyncpa [#allocation4], 0
    // Predicated region
    $region2: #{tpu_custom_call.1} parent=1 // pred_check
      _
    $region3: #{tpu_custom_call.1} parent=1 // pred_check_branch
      %17 = sbr.rel (0) target = $region5
    $region4: #{tpu_custom_call.1} parent=1 // pred_region
      %19 = vsyncadd [#allocation3], 0
      %s21 = sshll.u32 %s0, 4
      %s22 = int_to_ptr.hbm [resolvable:$true] %s21
      %s23 = sshll.u32 [#allocation2], 4
      %s24 = int_to_ptr.vmem [resolvable:$true] %s23
      %26 = dma.hbm_to_vmem [thread:$0]  %s22, 128, %s24, [#allocation3]
    $region5: #{tpu_custom_call.1} parent=1 // pred_fallthru
      _
    // Predicated region
    $region6: #{tpu_custom_call.1} parent=1 // pred_check
      _
    $region7: #{tpu_custom_call.1} parent=1 // pred_check_branch
      %28 = sbr.rel (0) target = $region9
    $region8: #{tpu_custom_call.1} parent=1 // pred_region
      %30 = vsyncadd [#allocation6], 0
      %s32 = sshll.u32 %s1, 4
      %s33 = int_to_ptr.hbm [resolvable:$true] %s32
      %s34 = sshll.u32 [#allocation5], 4
      %s35 = int_to_ptr.vmem [resolvable:$true] %s34
      %37 = dma.hbm_to_vmem [thread:$0]  %s33, 128, %s35, [#allocation6]
    $region9: #{tpu_custom_call.1} parent=1 // pred_fallthru
      _
    // Predicated region
    $region10: #{tpu_custom_call.1} parent=1 // pred_check
      _
    $region11: #{tpu_custom_call.1} parent=1 // pred_check_branch
      %39 = sbr.rel (0) target = $region13
    $region12: #{tpu_custom_call.1} parent=1 // pred_region
      %41 = vsyncadd [#allocation6], 0
      %s42 = sshll.u32 %s2, 4
      %s43 = int_to_ptr.hbm [resolvable:$true] %s42
      %s44 = sshll.u32 [#allocation7], 4
      %s45 = int_to_ptr.vmem [resolvable:$true] %s44
      %50 = dma.hbm_to_vmem [thread:$0]  %s43, 384, %s45, [#allocation6], 128, 128, 8
    $region13: #{tpu_custom_call.1} parent=1 // pred_fallthru
      _
    // Predicated region
    $region14: #{tpu_custom_call.1} parent=1 // pred_check
      _
    $region15: #{tpu_custom_call.1} parent=1 // pred_check_branch
      %52 = sbr.rel (0) target = $region17
    $region16: #{tpu_custom_call.1} parent=1 // pred_region
      %54 = vsyncadd [#allocation9], 0
      %s56 = sshll.u32 %s3, 4
      %s57 = int_to_ptr.hbm [resolvable:$true] %s56
      %s58 = sshll.u32 [#allocation8], 4
      %s59 = int_to_ptr.vmem [resolvable:$true] %s58
      %61 = dma.hbm_to_vmem [thread:$0]  %s57, 128, %s59, [#allocation9]
    $region17: #{tpu_custom_call.1} parent=1 // pred_fallthru
      _
    // Predicated region
    $region18: #{tpu_custom_call.1} parent=1 // pred_check
      _
    $region19: #{tpu_custom_call.1} parent=1 // pred_check_branch
      %63 = sbr.rel (0) target = $region21
    $region20: #{tpu_custom_call.1} parent=1 // pred_region
      %65 = vsyncadd [#allocation9], 0
      %s66 = sshll.u32 %s4, 4
      %s67 = int_to_ptr.hbm [resolvable:$true] %s66
      %s68 = sshll.u32 [#allocation10], 4
      %s69 = int_to_ptr.vmem [resolvable:$true] %s68
      %74 = dma.hbm_to_vmem [thread:$0]  %s67, 512, %s69, [#allocation9], 128, 128, 8
    $region21: #{tpu_custom_call.1} parent=1 // pred_fallthru
      _
    // Predicated region
    $region22: #{tpu_custom_call.1} parent=1 // pred_check
      _
    $region23: #{tpu_custom_call.1} parent=1 // pred_check_branch
      %76 = sbr.rel (0) target = $region25
    $region24: #{tpu_custom_call.1} parent=1 // pred_region
      %78 = vsyncadd [#allocation12], 0
      %s80 = sshll.u32 %s5, 4
      %s81 = int_to_ptr.hbm [resolvable:$true] %s80
      %s82 = sshll.u32 [#allocation11], 4
      %s83 = int_to_ptr.vmem [resolvable:$true] %s82
      %85 = dma.hbm_to_vmem [thread:$0]  %s81, 128, %s83, [#allocation12]
    $region25: #{tpu_custom_call.1} parent=1 // pred_fallthru
      _
    // Predicated region
    $region26: #{tpu_custom_call.1} parent=1 // pred_check
      _
    $region27: #{tpu_custom_call.1} parent=1 // pred_check_branch
      %87 = sbr.rel (0) target = $region29
    $region28: #{tpu_custom_call.1} parent=1 // pred_region
      %89 = dma.done [#allocation3], 128
    $region29: #{tpu_custom_call.1} parent=1 // pred_fallthru
      _
    // Predicated region
    $region30: #{tpu_custom_call.1} parent=1 // pred_check
      _
    $region31: #{tpu_custom_call.1} parent=1 // pred_check_branch
      %91 = sbr.rel (0) target = $region33
    $region32: #{tpu_custom_call.1} parent=1 // pred_region
      %93 = dma.done [#allocation6], 128
    $region33: #{tpu_custom_call.1} parent=1 // pred_fallthru
      _
    // Predicated region
    $region34: #{tpu_custom_call.1} parent=1 // pred_check
      _
    $region35: #{tpu_custom_call.1} parent=1 // pred_check_branch
      %95 = sbr.rel (0) target = $region37
    $region36: #{tpu_custom_call.1} parent=1 // pred_region
      %97 = dma.done [#allocation6], 384
    $region37: #{tpu_custom_call.1} parent=1 // pred_fallthru
      _
    // Predicated region
    $region38: #{tpu_custom_call.1} parent=1 // pred_check
      _
    $region39: #{tpu_custom_call.1} parent=1 // pred_check_branch
      %99 = sbr.rel (0) target = $region41
    $region40: #{tpu_custom_call.1} parent=1 // pred_region
      %101 = dma.done [#allocation9], 128
    $region41: #{tpu_custom_call.1} parent=1 // pred_fallthru
      _
    // Predicated region
    $region42: #{tpu_custom_call.1} parent=1 // pred_check
      _
    $region43: #{tpu_custom_call.1} parent=1 // pred_check_branch
      %103 = sbr.rel (0) target = $region45
    $region44: #{tpu_custom_call.1} parent=1 // pred_region
      %105 = dma.done [#allocation9], 512
    $region45: #{tpu_custom_call.1} parent=1 // pred_fallthru
      _
    // Predicated region
    $region46: #{tpu_custom_call.1} parent=1 // pred_check
      _
    $region47: #{tpu_custom_call.1} parent=1 // pred_check_branch
      %107 = sbr.rel (0) target = $region49
    $region48: #{tpu_custom_call.1} parent=1 // pred_region
      %109 = dma.done [#allocation12], 128
    $region49: #{tpu_custom_call.1} parent=1 // pred_fallthru
      _
    %v110 = vld [vmem:[#allocation11] sm:$0x1]
    %v111 = vld [vmem:[#allocation11 + $0x1] sm:$0x1]
    %v112 = vld [vmem:[#allocation11 + $0x2] sm:$0x1]
    %v113 = vld [vmem:[#allocation11 + $0x3] sm:$0x1]
    %v114 = vld [vmem:[#allocation11 + $0x4] sm:$0x1]
    %v115 = vld [vmem:[#allocation11 + $0x5] sm:$0x1]
    %v116 = vld [vmem:[#allocation11 + $0x7] sm:$0x1]
    %v117 = vld [vmem:[#allocation2] sm:$0xff]
    %v118 = vld [vmem:[#allocation5] sm:$0xff]
    %v119 = vld [vmem:[#allocation7] sm:$0xff]
    %v120 = vld [vmem:[#allocation7 + $0x8] sm:$0xff]
    %v121 = vld [vmem:[#allocation7 + $0x10] sm:$0xff]
    %v122 = vld [vmem:[#allocation8] sm:$0xff]
    %vm123 = vcmask 64512
    %v125 = vsel %vm123, %v118, 0
    %127 = vmatpush.msra.mxu0 0.0
    %128 = vmatpush.msra.mxu0 0.0
    %129 = vmatpush.msra.mxu0 0.0
    %130 = vmatpush.msra.mxu0 0.0
    %131 = vmatpush.msra.mxu0 0.0
    %132 = vmatpush.msra.mxu0 0.0
    %133 = vmatpush.msra.mxu0 0.0
    %134 = vmatpush.msra.mxu0 0.0
    %135 = vmatpush.msra.mxu0 0.0
    %136 = vmatpush.msra.mxu0 0.0
    %137 = vmatpush.msra.mxu0 0.0
    %138 = vmatpush.msra.mxu0 0.0
    %139 = vmatpush.msra.mxu0 0.0
    %140 = vmatpush.msra.mxu0 0.0
    %141 = vmatpush.msra.mxu0 0.0
    %142 = vmatpush.msra.mxu0 %v122
    %143 = vmatmul.f32.gmra.mxu0 %v125
    %v144 = vpop.f32.mrf.mxu0
    %v145 = vadd.f32 0.0, %v144
    %146 = vdwg.mxu0
    %vm147 = vcmask 195584
    %v149 = vsel %vm147, %v117, 0
    %151 = vmatpush.msra.mxu0 0.0
    %152 = vmatpush.msra.mxu0 0.0
    %153 = vmatpush.msra.mxu0 0.0
    %154 = vmatpush.msra.mxu0 0.0
    %155 = vmatpush.msra.mxu0 0.0
    %156 = vmatpush.msra.mxu0 0.0
    %157 = vmatpush.msra.mxu0 0.0
    %158 = vmatpush.msra.mxu0 0.0
    %159 = vmatpush.msra.mxu0 0.0
    %160 = vmatpush.msra.mxu0 0.0
    %161 = vmatpush.msra.mxu0 0.0
    %162 = vmatpush.msra.mxu0 0.0
    %163 = vmatpush.msra.mxu0 0.0
    %164 = vmatpush.msra.mxu0 %v121
    %165 = vmatpush.msra.mxu0 %v120
    %166 = vmatpush.msra.mxu0 %v119
    %167 = vmatmul.f32.gmra.mxu0 %v149
    %v168 = vpop.f32.mrf.mxu0
    %v169 = vadd.f32 %v145, %v168
    %170 = vdwg.mxu0
    %v171 = vperm.slane %v110, 0
    %v172 = vadd.f32 %v169, %v171
    %vm173 = vcmask 261120
    %v174 = vsel %vm173, %v172, 0.0
    %175 = vadd.xlane.f32.xlu0 %v174
    %v176 = vpop.xlane.xlu0 %175
    %v177 = vrcp.pop 32.0
    %v178 = vmul.f32 32.0, %v177
    %v179 = vsub.f32 1.0, %v178
    %v180 = vmul.f32 %v177, %v179
    %v181 = vadd.f32 %v177, %v180
    %vm182 = vweird.f32 %v177
    %v183 = vsel %vm182, %v177, %v181
    %v184 = vmul.f32 %v176, %v183
    %v185 = vmul.f32 %v172, %v172
    %v186 = vsel %vm173, %v185, 0.0
    %187 = vadd.xlane.f32.xlu0 %v186
    %v188 = vpop.xlane.xlu0 %187
    %v189 = vmul.f32 %v188, %v183
    %v190 = vsub.f32 %v172, %v184
    %v191 = vmul.f32 %v184, %v184
    %v192 = vsub.f32 %v189, %v191
    %v193 = vadd.f32 %v192, 1e-05
    %v194 = vrsqrt.pop %v193
    %v195 = vmul.f32 %v194, %v193
    %v196 = vmul.f32 %v195, %v194
    %v197 = vmul.f32 0.5, %v196
    %v198 = vsub.f32 1.5, %v197
    %v199 = vmul.f32 %v194, %v198
    %vm200 = vweird.f32 %v193
    %vm201 = vweird.f32 %v194
    %vm202 = vmor %vm200, %vm201
    %v203 = vsel %vm202, %v194, %v199
    %v204 = vmul.f32 %v190, %v203
    %v205 = vperm.slane %v111, 0
    %v206 = vmul.f32 %v204, %v205
    %v207 = vperm.slane %v112, 0
    %v208 = vadd.f32 %v206, %v207
    %v209 = vtanh.pop %v208
    %v210 = vld [vmem:[#allocation10] sm:$0xff]
    %v211 = vld [vmem:[#allocation10 + $0x8] sm:$0xff]
    %v212 = vld [vmem:[#allocation10 + $0x10] sm:$0xff]
    %v213 = vld [vmem:[#allocation10 + $0x18] sm:$0xff]
    %v214 = vperm.slane %v113, 0
    %v216 = vsel %vm173, %v209, 0
    %218 = vmatpush.msra.mxu0 0.0
    %219 = vmatpush.msra.mxu0 0.0
    %220 = vmatpush.msra.mxu0 0.0
    %221 = vmatpush.msra.mxu0 0.0
    %222 = vmatpush.msra.mxu0 0.0
    %223 = vmatpush.msra.mxu0 0.0
    %224 = vmatpush.msra.mxu0 0.0
    %225 = vmatpush.msra.mxu0 0.0
    %226 = vmatpush.msra.mxu0 0.0
    %227 = vmatpush.msra.mxu0 0.0
    %228 = vmatpush.msra.mxu0 0.0
    %229 = vmatpush.msra.mxu0 0.0
    %230 = vmatpush.msra.mxu0 %v213
    %231 = vmatpush.msra.mxu0 %v212
    %232 = vmatpush.msra.mxu0 %v211
    %233 = vmatpush.msra.mxu0 %v210
    %234 = vmatmul.f32.gmra.mxu0 %v216
    %v235 = vpop.f32.mrf.mxu0
    %v236 = vadd.f32 %v214, %v235
    %237 = vdwg.mxu0
    %v238 = vsel %vm173, %v236, 0.0
    %239 = vadd.xlane.f32.xlu0 %v238
    %v240 = vpop.xlane.xlu0 %239
    %v241 = vmul.f32 %v240, %v183
    %v242 = vmul.f32 %v236, %v236
    %v243 = vsel %vm173, %v242, 0.0
    %244 = vadd.xlane.f32.xlu0 %v243
    %v245 = vpop.xlane.xlu0 %244
    %v246 = vmul.f32 %v245, %v183
    %v247 = vsub.f32 %v236, %v241
    %v248 = vmul.f32 %v241, %v241
    %v249 = vsub.f32 %v246, %v248
    %v250 = vadd.f32 %v249, 1e-05
    %v251 = vrsqrt.pop %v250
    %v252 = vmul.f32 %v251, %v250
    %v253 = vmul.f32 %v252, %v251
    %v254 = vmul.f32 0.5, %v253
    %v255 = vsub.f32 1.5, %v254
    %v256 = vmul.f32 %v251, %v255
    %vm257 = vweird.f32 %v250
    %vm258 = vweird.f32 %v251
    %vm259 = vmor %vm257, %vm258
    %v260 = vsel %vm259, %v251, %v256
    %v261 = vmul.f32 %v247, %v260
    %v262 = vperm.slane %v114, 0
    %v263 = vmul.f32 %v261, %v262
    %v264 = vperm.slane %v115, 0
    %v265 = vadd.f32 %v263, %v264
    %v266 = vtanh.pop %v265
    %v267 = vld [vmem:[#allocation11] sm:$0xff]
    %v269 = vsel %vm173, %v267, 0
    %v272 = vsel %vm173, %v266, 0
    %274 = vmatpush.xpose.msra.mxu0 0.0
    %275 = vmatpush.xpose.msra.mxu0 0.0
    %276 = vmatpush.xpose.msra.mxu0 0.0
    %277 = vmatpush.xpose.msra.mxu0 0.0
    %278 = vmatpush.xpose.msra.mxu0 0.0
    %279 = vmatpush.xpose.msra.mxu0 0.0
    %280 = vmatpush.xpose.msra.mxu0 0.0
    %281 = vmatpush.xpose.msra.mxu0 0.0
    %282 = vmatpush.xpose.msra.mxu0 0.0
    %283 = vmatpush.xpose.msra.mxu0 0.0
    %284 = vmatpush.xpose.msra.mxu0 0.0
    %285 = vmatpush.xpose.msra.mxu0 0.0
    %286 = vmatpush.xpose.msra.mxu0 0.0
    %287 = vmatpush.xpose.msra.mxu0 0.0
    %288 = vmatpush.xpose.msra.mxu0 0.0
    %289 = vmatpush.xpose.msra.mxu0 %v272
    %290 = vmatmul.f32.gmra.mxu0 %v269
    %v291 = vpop.f32.mrf.mxu0
    %v292 = vadd.f32 0.0, %v291
    %293 = vdwg.mxu0
    %295 = vset.pattern.permute.xlu0 0
    %296 = vperm.xlu0 %295, %v116
    %v297 = vpop.permute.xlu0 %296
    %v298 = vrot.slane %v297, 2
    %v300 = vadd.f32 %v292, %v298
    %vm301 = vcmask 63494
    %302 = vst.msk [vmem:[#allocation13 - $0x6] sm:$0x40] %vm301, %v300
    // Predicated region
    $region50: #{tpu_custom_call.1} parent=1 // pred_check
      _
    $region51: #{tpu_custom_call.1} parent=1 // pred_check_branch
      %304 = sbr.rel (0) target = $region53
    $region52: #{tpu_custom_call.1} parent=1 // pred_region
      %306 = vsyncadd [#allocation4], 0
      %s308 = sshll.u32 [#allocation13], 4
      %s309 = int_to_ptr.vmem [resolvable:$true] %s308
      %s310 = sshll.u32 %s6, 4
      %s311 = int_to_ptr.hbm [resolvable:$true] %s310
      %313 = dma.vmem_to_hbm [thread:$0]  %s309, 16, %s311, [#allocation4]
    $region53: #{tpu_custom_call.1} parent=1 // pred_fallthru
      _
    // Predicated region
    $region54: #{tpu_custom_call.1} parent=1 // pred_check
      _
    $region55: #{tpu_custom_call.1} parent=1 // pred_check_branch
      %315 = sbr.rel (0) target = $region57
    $region56: #{tpu_custom_call.1} parent=1 // pred_region
      %317 = dma.done [#allocation4], 16
    $region57: #{tpu_custom_call.1} parent=1 // pred_fallthru
      _
    %318 = vsyncpa [#allocation3], 1
    %319 = vsyncpa [#allocation6], 1
    %320 = vsyncpa [#allocation9], 1
    %321 = vsyncpa [#allocation12], 1
    %322 = vsyncpa [#allocation4], 1

</llo_original>
